<compile_context>
chip_gen: v7x
topology: tpu7x:2x2x1
jax: 0.10.0
libtpu: 0.0.40
codegen_flags: <defaults>
</compile_context>

<pallas_src>
import numpy as np
import jax
import jax.numpy as jnp
from jax.experimental import pallas as pl
from jax.experimental.pallas import tpu as pltpu

# Fixed Gaussian from the module's __init__ (deterministic, no checkpoint).
_GAUSS = (np.array(
    [[1.,  4.,  6.,  4., 1.],
     [4., 16., 24., 16., 4.],
     [6., 24., 36., 24., 6.],
     [4., 16., 24., 16., 4.],
     [1.,  4.,  6.,  4., 1.]], dtype=np.float32) / 256.0)
_K4 = 4.0 * _GAUSS                      # upsample() convolves with 4 * kernel
# 4*G == outer(k, k) / 64 with k = [1,4,6,4,1]  =>  separable 1-D taps k / 8.
_K1 = [float(v) / 8.0 for v in (1.0, 4.0, 6.0, 4.0, 1.0)]


def _edge_kernel(x_ref, o_ref, hpad_ref, vpad_ref):
    """TN (batch*channel) slices per grid step.

    x_ref    : (TN, H, W)     input slices
    o_ref    : (TN, H, W)     edge output
    hpad_ref : (TN, H, W+4)   scratch: col-masked, col-reflect-padded input
    vpad_ref : (TN, H+4, W)   scratch: row-masked, row-reflect-padded H-pass
    """
    x = x_ref[...].astype(jnp.float32)
    TN, H, W = x.shape

    # Column parity mask (keep even columns) as a tiny (1,1,W) vector.
    col_even = (jax.lax.broadcasted_iota(jnp.int32, (1, 1, W), 2) % 2) == 0
    xc = x * col_even.astype(jnp.float32)

    # In-VMEM reflect pad (2) along W. Reflection maps even<->even columns,
    # so masking before padding is exact.
    hpad_ref[:, :, 2:2 + W] = xc
    hpad_ref[:, :, 0:1] = xc[:, :, 2:3]
    hpad_ref[:, :, 1:2] = xc[:, :, 1:2]
    hpad_ref[:, :, W + 2:W + 3] = xc[:, :, W - 2:W - 1]
    hpad_ref[:, :, W + 3:W + 4] = xc[:, :, W - 3:W - 2]

    # Horizontal 5-tap pass (VPU shifted MACs).
    th = _K1[0] * hpad_ref[:, :, 0:W]
    for j in range(1, 5):
        th = th + _K1[j] * hpad_ref[:, :, j:j + W]

    # Row parity mask (keep even rows) as a tiny (1,H,1) vector.
    row_even = (jax.lax.broadcasted_iota(jnp.int32, (1, H, 1), 1) % 2) == 0
    th = th * row_even.astype(jnp.float32)

    # In-VMEM reflect pad (2) along H.
    vpad_ref[:, 2:2 + H, :] = th
    vpad_ref[:, 0:1, :] = th[:, 2:3, :]
    vpad_ref[:, 1:2, :] = th[:, 1:2, :]
    vpad_ref[:, H + 2:H + 3, :] = th[:, H - 2:H - 1, :]
    vpad_ref[:, H + 3:H + 4, :] = th[:, H - 3:H - 2, :]

    # Vertical 5-tap pass.
    blur = _K1[0] * vpad_ref[:, 0:H, :]
    for i in range(1, 5):
        blur = blur + _K1[i] * vpad_ref[:, i:i + H, :]

    # edge = input - blur(upsample(downsample(input)))
    o_ref[...] = (x - blur).astype(o_ref.dtype)


def _choose_block(N, H, W, budget_bytes=2 << 20):
    """Largest divisor TN of N whose per-step working set stays small (fits the
    default scoped VMEM on every chip, incl. v7x's 32 MiB), preferring a grid
    with >= 2 steps so v7x can shard steps across its two TensorCores."""
    per_slice = H * W * 4 * 6  # in/out (double-buffered) + 2 padded scratches, f32
    max_tn = max(1, budget_bytes // per_slice)
    divs = [d for d in range(1, N + 1) if N % d == 0 and d <= max_tn]
    if not divs:
        return 1
    multi = [d for d in divs if N // d >= 2]
    return max(multi) if multi else max(divs)


def extract_edge(x):
    """x: (B, C, H, W) float32; H and W must be even and >= 4 (module requirement)."""
    B, C, H, W = x.shape
    if (H % 2) or (W % 2) or H < 4 or W < 4:
        raise ValueError("Extractedge requires even H, W with H, W >= 4")
    N = B * C
    xf = x.reshape(N, H, W)
    TN = _choose_block(N, H, W)
    # TODO(synk): for very large images (single slice >> 2 MiB) add spatial row
    # tiling with a 4-row halo; also consider lane-packing several channels
    # side-by-side when W < 128 to get lane-dense stores.
    out = pl.pallas_call(
        _edge_kernel,
        out_shape=jax.ShapeDtypeStruct((N, H, W), x.dtype),
        grid=(N // TN,),
        in_specs=[pl.BlockSpec((TN, H, W), lambda n: (n, 0, 0))],
        out_specs=pl.BlockSpec((TN, H, W), lambda n: (n, 0, 0)),
        scratch_shapes=[
            pltpu.VMEM((TN, H, W + 4), jnp.float32),
            pltpu.VMEM((TN, H + 4, W), jnp.float32),
        ],
        compiler_params=pltpu.CompilerParams(dimension_semantics=("parallel",)),
    )(xf)
    return out.reshape(B, C, H, W)


def _reference(x):
    """Pure-JAX reference mirroring the PyTorch forward exactly."""
    B, C, H, W = x.shape
    mask = ((jnp.arange(H) % 2 == 0)[:, None]) & ((jnp.arange(W) % 2 == 0)[None, :])
    x_up = x * mask.astype(x.dtype)                        # downsample + zero-stuff
    xp = jnp.pad(x_up, ((0, 0), (0, 0), (2, 2), (2, 2)), mode="reflect")
    w = jnp.broadcast_to(jnp.asarray(_K4), (C, 1, 5, 5))   # depthwise (groups=C)
    blur = jax.lax.conv_general_dilated(
        xp, w, window_strides=(1, 1), padding="VALID",
        dimension_numbers=("NCHW", "OIHW", "NCHW"), feature_group_count=C)
    return x - blur


if __name__ == "__main__":
    key = jax.random.PRNGKey(0)
    x = jax.random.normal(key, (2, 4, 16, 16), dtype=jnp.float32)

    edge = extract_edge(x)
    jax.block_until_ready(edge)

    ref = _reference(x)
    np.testing.assert_allclose(np.asarray(edge), np.asarray(ref), rtol=1e-5, atol=1e-5)
    assert edge.shape == x.shape and edge.dtype == x.dtype
    print("KERNEL_OK")
</pallas_src>

<mosaic_0001>
module attributes {stable_mosaic.version = 11 : i64} {
  func.func @_edge_kernel(%arg0: i32, %arg1: memref<4x16x16xf32, #tpu.memory_space<vmem>>, %arg2: memref<4x16x16xf32, #tpu.memory_space<vmem>>, %arg3: memref<4x16x20xf32, #tpu.memory_space<vmem>>, %arg4: memref<4x20x16xf32, #tpu.memory_space<vmem>>) attributes {dimension_semantics = [#tpu.dimension_semantics<parallel>], iteration_bounds = array<i64: 2>, scalar_prefetch = 0 : i64, scratch_operands = 2 : i64, tpu.core_type = #tpu.core_type<tc>, window_params = [{transform_indices = @transform_0, window_bounds = array<i64: 4, 16, 16>}, {transform_indices = @transform_1, window_bounds = array<i64: 4, 16, 16>}]} {
    %c0 = arith.constant 0 : index
    %c0_0 = arith.constant 0 : index
    %c0_1 = arith.constant 0 : index
    %0 = vector.load %arg1[%c0, %c0_0, %c0_1] : memref<4x16x16xf32, #tpu.memory_space<vmem>>, vector<4x16x16xf32>
    %1 = tpu.iota {dimensions = array<i32: 2>} : vector<1x1x16xi32>
    %c2_i32 = arith.constant 2 : i32
    %c0_i32 = arith.constant 0 : i32
    %2 = arith.cmpi eq, %c2_i32, %c0_i32 : i32
    %c1_i32 = arith.constant 1 : i32
    %3 = arith.select %2, %c1_i32, %c2_i32 : i32
    %4 = vector.broadcast %3 : i32 to vector<1x1x16xi32>
    %5 = arith.remsi %1, %4 : vector<1x1x16xi32>
    %c0_i32_2 = arith.constant 0 : i32
    %6 = vector.broadcast %c0_i32_2 : i32 to vector<1x1x16xi32>
    %7 = arith.cmpi ne, %5, %6 : vector<1x1x16xi32>
    %c0_i32_3 = arith.constant 0 : i32
    %8 = vector.broadcast %c0_i32_3 : i32 to vector<1x1x16xi32>
    %9 = arith.cmpi slt, %5, %8 : vector<1x1x16xi32>
    %c0_i32_4 = arith.constant 0 : i32
    %10 = arith.cmpi slt, %3, %c0_i32_4 : i32
    %11 = vector.broadcast %10 : i1 to vector<1x1x16xi1>
    %12 = vector.broadcast %11 : vector<1x1x16xi1> to vector<1x1x16xi1>
    %13 = arith.xori %9, %12 : vector<1x1x16xi1>
    %14 = arith.andi %13, %7 : vector<1x1x16xi1>
    %15 = vector.broadcast %3 : i32 to vector<1x1x16xi32>
    %16 = arith.addi %5, %15 : vector<1x1x16xi32>
    %17 = arith.select %14, %16, %5 : vector<1x1x16xi1>, vector<1x1x16xi32>
    %c0_i32_5 = arith.constant 0 : i32
    %18 = vector.broadcast %c0_i32_5 : i32 to vector<1x1x16xi32>
    %19 = arith.cmpi eq, %17, %18 : vector<1x1x16xi32>
    %20 = arith.extui %19 : vector<1x1x16xi1> to vector<1x1x16xi32>
    %21 = arith.sitofp %20 : vector<1x1x16xi32> to vector<1x1x16xf32>
    %22 = vector.broadcast %21 : vector<1x1x16xf32> to vector<4x16x16xf32>
    %23 = arith.mulf %0, %22 : vector<4x16x16xf32>
    %c0_6 = arith.constant 0 : index
    %c0_7 = arith.constant 0 : index
    %c2 = arith.constant 2 : index
    %24 = vector.load %arg3[%c0_6, %c0_7, %c2] : memref<4x16x20xf32, #tpu.memory_space<vmem>>, vector<4x16x16xf32>
    tpu.vector_store %arg3[%c0_6, %c0_7, %c2], %23 {strides = array<i32>} : memref<4x16x20xf32, #tpu.memory_space<vmem>>, vector<4x16x16xf32>,
    %25 = vector.extract_strided_slice %23 {offsets = [0, 0, 2], sizes = [4, 16, 1], strides = [1, 1, 1]} : vector<4x16x16xf32> to vector<4x16x1xf32>
    %c0_8 = arith.constant 0 : index
    %c0_9 = arith.constant 0 : index
    %c0_10 = arith.constant 0 : index
    %26 = vector.load %arg3[%c0_8, %c0_9, %c0_10] : memref<4x16x20xf32, #tpu.memory_space<vmem>>, vector<4x16x1xf32>
    tpu.vector_store %arg3[%c0_8, %c0_9, %c0_10], %25 {strides = array<i32>} : memref<4x16x20xf32, #tpu.memory_space<vmem>>, vector<4x16x1xf32>,
    %27 = vector.extract_strided_slice %23 {offsets = [0, 0, 1], sizes = [4, 16, 1], strides = [1, 1, 1]} : vector<4x16x16xf32> to vector<4x16x1xf32>
    %c0_11 = arith.constant 0 : index
    %c0_12 = arith.constant 0 : index
    %c1 = arith.constant 1 : index
    %28 = vector.load %arg3[%c0_11, %c0_12, %c1] : memref<4x16x20xf32, #tpu.memory_space<vmem>>, vector<4x16x1xf32>
    tpu.vector_store %arg3[%c0_11, %c0_12, %c1], %27 {strides = array<i32>} : memref<4x16x20xf32, #tpu.memory_space<vmem>>, vector<4x16x1xf32>,
    %29 = vector.extract_strided_slice %23 {offsets = [0, 0, 14], sizes = [4, 16, 1], strides = [1, 1, 1]} : vector<4x16x16xf32> to vector<4x16x1xf32>
    %c0_13 = arith.constant 0 : index
    %c0_14 = arith.constant 0 : index
    %c18 = arith.constant 18 : index
    %30 = vector.load %arg3[%c0_13, %c0_14, %c18] : memref<4x16x20xf32, #tpu.memory_space<vmem>>, vector<4x16x1xf32>
    tpu.vector_store %arg3[%c0_13, %c0_14, %c18], %29 {strides = array<i32>} : memref<4x16x20xf32, #tpu.memory_space<vmem>>, vector<4x16x1xf32>,
    %31 = vector.extract_strided_slice %23 {offsets = [0, 0, 13], sizes = [4, 16, 1], strides = [1, 1, 1]} : vector<4x16x16xf32> to vector<4x16x1xf32>
    %c0_15 = arith.constant 0 : index
    %c0_16 = arith.constant 0 : index
    %c19 = arith.constant 19 : index
    %32 = vector.load %arg3[%c0_15, %c0_16, %c19] : memref<4x16x20xf32, #tpu.memory_space<vmem>>, vector<4x16x1xf32>
    tpu.vector_store %arg3[%c0_15, %c0_16, %c19], %31 {strides = array<i32>} : memref<4x16x20xf32, #tpu.memory_space<vmem>>, vector<4x16x1xf32>,
    %c0_17 = arith.constant 0 : index
    %c0_18 = arith.constant 0 : index
    %c0_19 = arith.constant 0 : index
    %33 = vector.load %arg3[%c0_17, %c0_18, %c0_19] : memref<4x16x20xf32, #tpu.memory_space<vmem>>, vector<4x16x16xf32>
    %cst = arith.constant 1.250000e-01 : f32
    %34 = vector.broadcast %cst : f32 to vector<4x16x16xf32>
    %35 = arith.mulf %34, %33 : vector<4x16x16xf32>
    %c0_20 = arith.constant 0 : index
    %c0_21 = arith.constant 0 : index
    %c1_22 = arith.constant 1 : index
    %36 = vector.load %arg3[%c0_20, %c0_21, %c1_22] : memref<4x16x20xf32, #tpu.memory_space<vmem>>, vector<4x16x16xf32>
    %cst_23 = arith.constant 5.000000e-01 : f32
    %37 = vector.broadcast %cst_23 : f32 to vector<4x16x16xf32>
    %38 = arith.mulf %37, %36 : vector<4x16x16xf32>
    %39 = arith.addf %35, %38 : vector<4x16x16xf32>
    %c0_24 = arith.constant 0 : index
    %c0_25 = arith.constant 0 : index
    %c2_26 = arith.constant 2 : index
    %40 = vector.load %arg3[%c0_24, %c0_25, %c2_26] : memref<4x16x20xf32, #tpu.memory_space<vmem>>, vector<4x16x16xf32>
    %cst_27 = arith.constant 7.500000e-01 : f32
    %41 = vector.broadcast %cst_27 : f32 to vector<4x16x16xf32>
    %42 = arith.mulf %41, %40 : vector<4x16x16xf32>
    %43 = arith.addf %39, %42 : vector<4x16x16xf32>
    %c0_28 = arith.constant 0 : index
    %c0_29 = arith.constant 0 : index
    %c3 = arith.constant 3 : index
    %44 = vector.load %arg3[%c0_28, %c0_29, %c3] : memref<4x16x20xf32, #tpu.memory_space<vmem>>, vector<4x16x16xf32>
    %cst_30 = arith.constant 5.000000e-01 : f32
    %45 = vector.broadcast %cst_30 : f32 to vector<4x16x16xf32>
    %46 = arith.mulf %45, %44 : vector<4x16x16xf32>
    %47 = arith.addf %43, %46 : vector<4x16x16xf32>
    %c0_31 = arith.constant 0 : index
    %c0_32 = arith.constant 0 : index
    %c4 = arith.constant 4 : index
    %48 = vector.load %arg3[%c0_31, %c0_32, %c4] : memref<4x16x20xf32, #tpu.memory_space<vmem>>, vector<4x16x16xf32>
    %cst_33 = arith.constant 1.250000e-01 : f32
    %49 = vector.broadcast %cst_33 : f32 to vector<4x16x16xf32>
    %50 = arith.mulf %49, %48 : vector<4x16x16xf32>
    %51 = arith.addf %47, %50 : vector<4x16x16xf32>
    %52 = tpu.iota {dimensions = array<i32: 1>} : vector<1x16x1xi32>
    %c2_i32_34 = arith.constant 2 : i32
    %c0_i32_35 = arith.constant 0 : i32
    %53 = arith.cmpi eq, %c2_i32_34, %c0_i32_35 : i32
    %c1_i32_36 = arith.constant 1 : i32
    %54 = arith.select %53, %c1_i32_36, %c2_i32_34 : i32
    %55 = vector.broadcast %54 : i32 to vector<1x16x1xi32>
    %56 = arith.remsi %52, %55 : vector<1x16x1xi32>
    %c0_i32_37 = arith.constant 0 : i32
    %57 = vector.broadcast %c0_i32_37 : i32 to vector<1x16x1xi32>
    %58 = arith.cmpi ne, %56, %57 : vector<1x16x1xi32>
    %c0_i32_38 = arith.constant 0 : i32
    %59 = vector.broadcast %c0_i32_38 : i32 to vector<1x16x1xi32>
    %60 = arith.cmpi slt, %56, %59 : vector<1x16x1xi32>
    %c0_i32_39 = arith.constant 0 : i32
    %61 = arith.cmpi slt, %54, %c0_i32_39 : i32
    %62 = vector.broadcast %61 : i1 to vector<1x16x1xi1>
    %63 = vector.broadcast %62 : vector<1x16x1xi1> to vector<1x16x1xi1>
    %64 = arith.xori %60, %63 : vector<1x16x1xi1>
    %65 = arith.andi %64, %58 : vector<1x16x1xi1>
    %66 = vector.broadcast %54 : i32 to vector<1x16x1xi32>
    %67 = arith.addi %56, %66 : vector<1x16x1xi32>
    %68 = arith.select %65, %67, %56 : vector<1x16x1xi1>, vector<1x16x1xi32>
    %c0_i32_40 = arith.constant 0 : i32
    %69 = vector.broadcast %c0_i32_40 : i32 to vector<1x16x1xi32>
    %70 = arith.cmpi eq, %68, %69 : vector<1x16x1xi32>
    %71 = arith.extui %70 : vector<1x16x1xi1> to vector<1x16x1xi32>
    %72 = arith.sitofp %71 : vector<1x16x1xi32> to vector<1x16x1xf32>
    %73 = vector.broadcast %72 : vector<1x16x1xf32> to vector<4x16x16xf32>
    %74 = arith.mulf %51, %73 : vector<4x16x16xf32>
    %c0_41 = arith.constant 0 : index
    %c2_42 = arith.constant 2 : index
    %c0_43 = arith.constant 0 : index
    %75 = vector.load %arg4[%c0_41, %c2_42, %c0_43] : memref<4x20x16xf32, #tpu.memory_space<vmem>>, vector<4x16x16xf32>
    tpu.vector_store %arg4[%c0_41, %c2_42, %c0_43], %74 {strides = array<i32>} : memref<4x20x16xf32, #tpu.memory_space<vmem>>, vector<4x16x16xf32>,
    %76 = vector.extract_strided_slice %74 {offsets = [0, 2, 0], sizes = [4, 1, 16], strides = [1, 1, 1]} : vector<4x16x16xf32> to vector<4x1x16xf32>
    %c0_44 = arith.constant 0 : index
    %c0_45 = arith.constant 0 : index
    %c0_46 = arith.constant 0 : index
    %77 = vector.load %arg4[%c0_44, %c0_45, %c0_46] : memref<4x20x16xf32, #tpu.memory_space<vmem>>, vector<4x1x16xf32>
    tpu.vector_store %arg4[%c0_44, %c0_45, %c0_46], %76 {strides = array<i32>} : memref<4x20x16xf32, #tpu.memory_space<vmem>>, vector<4x1x16xf32>,
    %78 = vector.extract_strided_slice %74 {offsets = [0, 1, 0], sizes = [4, 1, 16], strides = [1, 1, 1]} : vector<4x16x16xf32> to vector<4x1x16xf32>
    %c0_47 = arith.constant 0 : index
    %c1_48 = arith.constant 1 : index
    %c0_49 = arith.constant 0 : index
    %79 = vector.load %arg4[%c0_47, %c1_48, %c0_49] : memref<4x20x16xf32, #tpu.memory_space<vmem>>, vector<4x1x16xf32>
    tpu.vector_store %arg4[%c0_47, %c1_48, %c0_49], %78 {strides = array<i32>} : memref<4x20x16xf32, #tpu.memory_space<vmem>>, vector<4x1x16xf32>,
    %80 = vector.extract_strided_slice %74 {offsets = [0, 14, 0], sizes = [4, 1, 16], strides = [1, 1, 1]} : vector<4x16x16xf32> to vector<4x1x16xf32>
    %c0_50 = arith.constant 0 : index
    %c18_51 = arith.constant 18 : index
    %c0_52 = arith.constant 0 : index
    %81 = vector.load %arg4[%c0_50, %c18_51, %c0_52] : memref<4x20x16xf32, #tpu.memory_space<vmem>>, vector<4x1x16xf32>
    tpu.vector_store %arg4[%c0_50, %c18_51, %c0_52], %80 {strides = array<i32>} : memref<4x20x16xf32, #tpu.memory_space<vmem>>, vector<4x1x16xf32>,
    %82 = vector.extract_strided_slice %74 {offsets = [0, 13, 0], sizes = [4, 1, 16], strides = [1, 1, 1]} : vector<4x16x16xf32> to vector<4x1x16xf32>
    %c0_53 = arith.constant 0 : index
    %c19_54 = arith.constant 19 : index
    %c0_55 = arith.constant 0 : index
    %83 = vector.load %arg4[%c0_53, %c19_54, %c0_55] : memref<4x20x16xf32, #tpu.memory_space<vmem>>, vector<4x1x16xf32>
    tpu.vector_store %arg4[%c0_53, %c19_54, %c0_55], %82 {strides = array<i32>} : memref<4x20x16xf32, #tpu.memory_space<vmem>>, vector<4x1x16xf32>,
    %c0_56 = arith.constant 0 : index
    %c0_57 = arith.constant 0 : index
    %c0_58 = arith.constant 0 : index
    %84 = vector.load %arg4[%c0_56, %c0_57, %c0_58] : memref<4x20x16xf32, #tpu.memory_space<vmem>>, vector<4x16x16xf32>
    %cst_59 = arith.constant 1.250000e-01 : f32
    %85 = vector.broadcast %cst_59 : f32 to vector<4x16x16xf32>
    %86 = arith.mulf %85, %84 : vector<4x16x16xf32>
    %c0_60 = arith.constant 0 : index
    %c1_61 = arith.constant 1 : index
    %c0_62 = arith.constant 0 : index
    %87 = vector.load %arg4[%c0_60, %c1_61, %c0_62] : memref<4x20x16xf32, #tpu.memory_space<vmem>>, vector<4x16x16xf32>
    %cst_63 = arith.constant 5.000000e-01 : f32
    %88 = vector.broadcast %cst_63 : f32 to vector<4x16x16xf32>
    %89 = arith.mulf %88, %87 : vector<4x16x16xf32>
    %90 = arith.addf %86, %89 : vector<4x16x16xf32>
    %c0_64 = arith.constant 0 : index
    %c2_65 = arith.constant 2 : index
    %c0_66 = arith.constant 0 : index
    %91 = vector.load %arg4[%c0_64, %c2_65, %c0_66] : memref<4x20x16xf32, #tpu.memory_space<vmem>>, vector<4x16x16xf32>
    %cst_67 = arith.constant 7.500000e-01 : f32
    %92 = vector.broadcast %cst_67 : f32 to vector<4x16x16xf32>
    %93 = arith.mulf %92, %91 : vector<4x16x16xf32>
    %94 = arith.addf %90, %93 : vector<4x16x16xf32>
    %c0_68 = arith.constant 0 : index
    %c3_69 = arith.constant 3 : index
    %c0_70 = arith.constant 0 : index
    %95 = vector.load %arg4[%c0_68, %c3_69, %c0_70] : memref<4x20x16xf32, #tpu.memory_space<vmem>>, vector<4x16x16xf32>
    %cst_71 = arith.constant 5.000000e-01 : f32
    %96 = vector.broadcast %cst_71 : f32 to vector<4x16x16xf32>
    %97 = arith.mulf %96, %95 : vector<4x16x16xf32>
    %98 = arith.addf %94, %97 : vector<4x16x16xf32>
    %c0_72 = arith.constant 0 : index
    %c4_73 = arith.constant 4 : index
    %c0_74 = arith.constant 0 : index
    %99 = vector.load %arg4[%c0_72, %c4_73, %c0_74] : memref<4x20x16xf32, #tpu.memory_space<vmem>>, vector<4x16x16xf32>
    %cst_75 = arith.constant 1.250000e-01 : f32
    %100 = vector.broadcast %cst_75 : f32 to vector<4x16x16xf32>
    %101 = arith.mulf %100, %99 : vector<4x16x16xf32>
    %102 = arith.addf %98, %101 : vector<4x16x16xf32>
    %103 = arith.subf %0, %102 : vector<4x16x16xf32>
    %c0_76 = arith.constant 0 : index
    %c0_77 = arith.constant 0 : index
    %c0_78 = arith.constant 0 : index
    %104 = vector.load %arg2[%c0_76, %c0_77, %c0_78] : memref<4x16x16xf32, #tpu.memory_space<vmem>>, vector<4x16x16xf32>
    tpu.vector_store %arg2[%c0_76, %c0_77, %c0_78], %103 {strides = array<i32>} : memref<4x16x16xf32, #tpu.memory_space<vmem>>, vector<4x16x16xf32>,
    return
  }
  func.func @transform_0(%arg0: i32) -> (i32, i32, i32) {
    %c0_i32 = arith.constant 0 : i32
    %c0_i32_0 = arith.constant 0 : i32
    %c0_i32_1 = arith.constant 0 : i32
    return %arg0, %c0_i32, %c0_i32_0 : i32, i32, i32
  }
  func.func @transform_1(%arg0: i32) -> (i32, i32, i32) {
    %c0_i32 = arith.constant 0 : i32
    %c0_i32_0 = arith.constant 0 : i32
    %c0_i32_1 = arith.constant 0 : i32
    return %arg0, %c0_i32, %c0_i32_0 : i32, i32, i32
  }
}

</mosaic_0001>

<llo_original>
// kernel: tpu_custom_call.1
$region0: #{tpu_custom_call.1}
  #allocation0 [shape = 'u32[]', space=smem, size = 0x4, offset = 0x4, fixed_abs, tag = 'smem constant byte address 0x4 - core index']
  #allocation1 [shape = 'u32[144,128]{1,0:T(1,128)}', space=vmem, size = 0x12000, scoped, tag = 'internal scratch']
  #allocation2 [shape = 'f32[4,16,20]{2,1,0:T(8,128)}', space=vmem, size = 0x8000, scoped, tag = 'scratch operand']
  #allocation3 [shape = 'f32[4,20,16]{2,1,0:T(8,128)}', space=vmem, size = 0xc000, scoped, tag = 'scratch operand']
  %s0 = inlined_call_operand.hbm [shape: f32[8,16,16], index: 0, kind: input, shape index: {}]
  %s1 = inlined_call_operand.hbm [shape: f32[8,16,16], index: 1, kind: output, shape index: {}]
  %s2 = sld [smem:[#allocation0]]
  $region41: #{tpu_custom_call.1} parent=0
    _
  %s4 = ssub.s32 1, %s2
  %s5 = scalar_select 0, %s4, %s2
  $region1: #{tpu_custom_call.1} parent=0
    #allocation4 [shape = 'u8[65536]{0}', space=vmem, size = 0x10000, scoped, tag = 'input window, operand 0']
    #allocation5 [shape = 's32[2]{0}', space=sflag, size = 0x8, scoped, tag = 'scoped memory for tpu_custom_call.1']
    #allocation6 [shape = 's32[2]{0}', space=sflag, size = 0x8, scoped, tag = 'scoped memory for tpu_custom_call.1']
    #allocation7 [shape = 'u8[65536]{0}', space=vmem, size = 0x10000, scoped, tag = 'output window, operand 0']
    %6 = vsyncpa [#allocation5], 0
    %s7 = scalar_lea.sflag [#allocation5], 1
    %8 = vsyncpa %s7, 0
    %9 = vsyncpa [#allocation6], 0
    %s10 = scalar_lea.sflag [#allocation6], 1
    %11 = vsyncpa %s10, 0
    loop: start=0, step=1, limit=4
    $region2: #{tpu_custom_call.1} parent=1 // loop_pre_header
      _
    $region3: #{tpu_custom_call.1} parent=1 // loop_header
      %s13 = sphi 0, %s17
      %p14 = scmp.ge.s32.totalorder %s13, 4
      %s23 = sphi 0, %s25
      %s26 = sphi 0, %s23
      %s27 = sphi 0, %s26
      %s43 = sphi 0, %s27
      %s49 = sphi 0, %s51
      %s52 = sphi 0, %s49
      %s53 = sphi 0, %s52
      %s69 = sphi 0, %s53
    $region4: #{tpu_custom_call.1} parent=1 // loop_header_branch
      %16 = sbr.rel (%p14) target = $region8
    $region5: #{tpu_custom_call.1} parent=1 // loop_body
      %s18 = ssub.s32 %s13, 1
      %s19 = ssub.s32 %s13, 2
      %s20 = sadd.s32 %s13, 1
      %s21 = ssub.s32 %s13, %s20
      %p22 = scmp.eq.s32.totalorder %s21, 0
      %s24 = sadd.s32 %s23, 1
      %s25 = scalar_select %p22, %s23, %s24
      %p28 = pneg %p22
      %p29 = scmp.eq.s32.totalorder %s13, 1
      %p30 = por %p28, %p29
      %p31 = scmp.ne.s32.totalorder %s23, %s26
      %p32 = scmp.eq.s32.totalorder %s13, 0
      %p33 = por %p31, %p32
      %p34 = scmp.ne.s32.totalorder %s23, %s26
      %p35 = scmp.eq.s32.totalorder %s18, 1
      %p36 = por %p34, %p35
      %p37 = scmp.ne.s32.totalorder %s26, %s27
      %p38 = scmp.eq.s32.totalorder %s18, 0
      %p39 = por %p37, %p38
      %p40 = scmp.ne.s32.totalorder %s26, %s27
      %p41 = scmp.eq.s32.totalorder %s19, 1
      %p42 = por %p40, %p41
      %p44 = scmp.ne.s32.totalorder %s27, %s43
      %p45 = scmp.eq.s32.totalorder %s19, 0
      %p46 = por %p44, %p45
      %s47 = ssub.s32 %s13, %s20
      %p48 = scmp.eq.s32.totalorder %s47, 0
      %s50 = sadd.s32 %s49, 1
      %s51 = scalar_select %p48, %s49, %s50
      %p54 = pneg %p48
      %p55 = scmp.eq.s32.totalorder %s13, 1
      %p56 = por %p54, %p55
      %p57 = scmp.ne.s32.totalorder %s49, %s52
      %p58 = scmp.eq.s32.totalorder %s13, 0
      %p59 = por %p57, %p58
      %p60 = scmp.ne.s32.totalorder %s49, %s52
      %p61 = scmp.eq.s32.totalorder %s18, 1
      %p62 = por %p60, %p61
      %p63 = scmp.ne.s32.totalorder %s52, %s53
      %p64 = scmp.eq.s32.totalorder %s18, 0
      %p65 = por %p63, %p64
      %p66 = scmp.ne.s32.totalorder %s52, %s53
      %p67 = scmp.eq.s32.totalorder %s19, 1
      %p68 = por %p66, %p67
      %p70 = scmp.ne.s32.totalorder %s53, %s69
      %p71 = scmp.eq.s32.totalorder %s19, 0
      %p72 = por %p70, %p71
      %p73 = scmp.le.s32.totalorder 1, %s13
      %p74 = scmp.lt.s32.totalorder %s13, 3
      %p75 = pnand %p73, %p74
      %p76 = pneg %p75
      // Predicated region
      $region9: #{tpu_custom_call.1} parent=5 // pred_check
        _
      $region10: #{tpu_custom_call.1} parent=5 // pred_check_branch
        %78 = sbr.rel (%p75) target = $region12
      $region11: #{tpu_custom_call.1} parent=5 // pred_region
        %s79 = ssub.s32 %s13, 1
      $region12: #{tpu_custom_call.1} parent=5 // pred_fallthru
        _
      %p80 = scmp.lt.s32.totalorder %s13, 2
      // Predicated region
      $region13: #{tpu_custom_call.1} parent=5 // pred_check
        %p81 = pneg %p80
      $region14: #{tpu_custom_call.1} parent=5 // pred_check_branch
        %83 = sbr.rel (%p81) target = $region16
      $region15: #{tpu_custom_call.1} parent=5 // pred_region
        // Predicated region
        $region17: #{tpu_custom_call.1} parent=15 // pred_check
          %p84 = pneg %p33
        $region18: #{tpu_custom_call.1} parent=15 // pred_check_branch
          %86 = sbr.rel (%p84) target = $region20
        $region19: #{tpu_custom_call.1} parent=15 // pred_region
          %s87 = sand.u32 %s23, 1
          %s88 = scalar_lea.sflag [#allocation5], %s87
          %s89 = sand.u32 %s23, 1
          %s90 = smul.addr %s89, 64
          %s91 = scalar_lea.vmem [#allocation4], %s90
          %s92 = smul.u32 4, %s13
          %s94 = ssub.s32 1024, 1024
          %95 = vsyncadd %s88, %s94
          %s96 = smul.addr %s92, 2
          %s97 = smul.addr %s96, 128
          %s98 = scalar_lea.hbm %s0, %s97
          %s99 = sshll.u32 %s91, 4
          %s100 = int_to_ptr.vmem [resolvable:$true] %s99
          %105 = dma.hbm_to_vmem [thread:$0]  %s98, 1024, %s100, %s88, 128, 128, 8
        $region20: #{tpu_custom_call.1} parent=15 // pred_fallthru
          _
      $region16: #{tpu_custom_call.1} parent=5 // pred_fallthru
        _
      %p106 = scmp.le.s32.totalorder 1, %s13
      %p107 = scmp.lt.s32.totalorder %s13, 3
      %p108 = pnand %p106, %p107
      %p109 = pneg %p108
      // Predicated region
      $region21: #{tpu_custom_call.1} parent=5 // pred_check
        _
      $region22: #{tpu_custom_call.1} parent=5 // pred_check_branch
        %111 = sbr.rel (%p108) target = $region24
      $region23: #{tpu_custom_call.1} parent=5 // pred_region
        %s112 = ssub.s32 %s13, 1
        %s113 = sand.u32 %s26, 1
        %s114 = scalar_lea.sflag [#allocation5], %s113
        %s115 = sand.u32 %s26, 1
        %s116 = smul.addr %s115, 64
        %s117 = scalar_lea.vmem [#allocation4], %s116
        // Predicated region
        $region25: #{tpu_custom_call.1} parent=23 // pred_check
          %p118 = pneg %p39
        $region26: #{tpu_custom_call.1} parent=23 // pred_check_branch
          %120 = sbr.rel (%p118) target = $region28
        $region27: #{tpu_custom_call.1} parent=23 // pred_region
          %121 = dma.done %s114, 1024
        $region28: #{tpu_custom_call.1} parent=23 // pred_fallthru
          _
        %s122 = sand.u32 %s26, 1
        %s123 = scalar_lea.sflag [#allocation5], %s122
        %s124 = sand.u32 %s26, 1
        %s125 = smul.addr %s124, 64
        %s126 = scalar_lea.vmem [#allocation4], %s125
        %p127 = pneg %p39
        %p128 = pneg %p36
        %p129 = pneg %p65
        %p130 = pneg %p62
        %s131 = sand.u32 %s52, 1
        %s132 = scalar_lea.sflag [#allocation6], %s131
        %s133 = sand.u32 %s52, 1
        %s134 = smul.addr %s133, 64
        %s135 = scalar_lea.vmem [#allocation7], %s134
        %s136 = smul.u32 4, %s18
        %s137 = smul.u32 4, %s18
        %v138 = vld [vmem:[%s117] sm:$0xff]
        %v139 = vld [vmem:[%s117 + $0x8] sm:$0xff]
        %v140 = vld [vmem:[%s117 + $0x10] sm:$0xff]
        %v141 = vld [vmem:[%s117 + $0x18] sm:$0xff]
        %v142 = vld [vmem:[%s117 + $0x20] sm:$0xff]
        %v143 = vld [vmem:[%s117 + $0x28] sm:$0xff]
        %v144 = vld [vmem:[%s117 + $0x30] sm:$0xff]
        %v145 = vld [vmem:[%s117 + $0x38] sm:$0xff]
        %v146 = vlaneseq
        %v147 = vand.u32 %v146, 127
        %vm148 = vcmp.lt.s32.totalorder %v147, 0
        %v149 = vsub.s32 0, %v147
        %v150 = vsel %vm148, %v149, %v147
        %v151 = vshrl.u32 %v150, 1
        %v152 = vand.u32 %v150, 1
        %v153 = vsub.s32 0, %v152
        %v154 = vsel %vm148, %v153, %v152
        %vm155 = vcmp.ne.s32.totalorder %v154, 0
        %vm156 = vcmp.lt.s32.totalorder %v154, 0
        %vm157 = vmand %vm156, %vm155
        %v158 = vadd.s32 %v154, 2
        %v159 = vsel %vm157, %v158, %v154
        %vm160 = vcmp.eq.s32.totalorder %v159, 0
        %v161 = vsel %vm160, 1, 0
        %v162 = vcvt.s32.f32 %v161
        %v163 = vmul.f32 %v138, %v162
        %v164 = vmul.f32 %v139, %v162
        %v165 = vmul.f32 %v140, %v162
        %v166 = vmul.f32 %v141, %v162
        %v167 = vmul.f32 %v142, %v162
        %v168 = vmul.f32 %v143, %v162
        %v169 = vmul.f32 %v144, %v162
        %v170 = vmul.f32 %v145, %v162
        %179 = vrot.lane.b32.xlu0 %v163, 2
        %v180 = vpop.permute.xlu0 %179
        %181 = vrot.lane.b32.xlu0 %v164, 2
        %v182 = vpop.permute.xlu0 %181
        %183 = vrot.lane.b32.xlu0 %v165, 2
        %v184 = vpop.permute.xlu0 %183
        %185 = vrot.lane.b32.xlu0 %v166, 2
        %v186 = vpop.permute.xlu0 %185
        %187 = vrot.lane.b32.xlu0 %v167, 2
        %v188 = vpop.permute.xlu0 %187
        %189 = vrot.lane.b32.xlu0 %v168, 2
        %v190 = vpop.permute.xlu0 %189
        %191 = vrot.lane.b32.xlu0 %v169, 2
        %v192 = vpop.permute.xlu0 %191
        %193 = vrot.lane.b32.xlu0 %v170, 2
        %v194 = vpop.permute.xlu0 %193
        %vm203 = vcmask 146448
        %204 = vst.msk [vmem:[#allocation2] sm:$0xff] %vm203, %v180
        %205 = vst.msk [vmem:[#allocation2 + $0x8] sm:$0xff] %vm203, %v182
        %206 = vst.msk [vmem:[#allocation2 + $0x10] sm:$0xff] %vm203, %v184
        %207 = vst.msk [vmem:[#allocation2 + $0x18] sm:$0xff] %vm203, %v186
        %208 = vst.msk [vmem:[#allocation2 + $0x20] sm:$0xff] %vm203, %v188
        %209 = vst.msk [vmem:[#allocation2 + $0x28] sm:$0xff] %vm203, %v190
        %210 = vst.msk [vmem:[#allocation2 + $0x30] sm:$0xff] %vm203, %v192
        %211 = vst.msk [vmem:[#allocation2 + $0x38] sm:$0xff] %vm203, %v194
        %212 = vrot.lane.b32.xlu0 %v163, 126
        %v213 = vpop.permute.xlu0 %212
        %214 = vrot.lane.b32.xlu0 %v164, 126
        %v215 = vpop.permute.xlu0 %214
        %216 = vrot.lane.b32.xlu0 %v165, 126
        %v217 = vpop.permute.xlu0 %216
        %218 = vrot.lane.b32.xlu0 %v166, 126
        %v219 = vpop.permute.xlu0 %218
        %220 = vrot.lane.b32.xlu0 %v167, 126
        %v221 = vpop.permute.xlu0 %220
        %222 = vrot.lane.b32.xlu0 %v168, 126
        %v223 = vpop.permute.xlu0 %222
        %224 = vrot.lane.b32.xlu0 %v169, 126
        %v225 = vpop.permute.xlu0 %224
        %226 = vrot.lane.b32.xlu0 %v170, 126
        %v227 = vpop.permute.xlu0 %226
        %vm236 = vcmask 7168
        %237 = vst.msk [vmem:[#allocation2] sm:$0xff] %vm236, %v213
        %238 = vst.msk [vmem:[#allocation2 + $0x8] sm:$0xff] %vm236, %v215
        %239 = vst.msk [vmem:[#allocation2 + $0x10] sm:$0xff] %vm236, %v217
        %240 = vst.msk [vmem:[#allocation2 + $0x18] sm:$0xff] %vm236, %v219
        %241 = vst.msk [vmem:[#allocation2 + $0x20] sm:$0xff] %vm236, %v221
        %242 = vst.msk [vmem:[#allocation2 + $0x28] sm:$0xff] %vm236, %v223
        %243 = vst.msk [vmem:[#allocation2 + $0x30] sm:$0xff] %vm236, %v225
        %244 = vst.msk [vmem:[#allocation2 + $0x38] sm:$0xff] %vm236, %v227
        %vm245 = vcmask 15368
        %246 = vst.msk [vmem:[#allocation2] sm:$0xff] %vm245, %v163
        %247 = vst.msk [vmem:[#allocation2 + $0x8] sm:$0xff] %vm245, %v164
        %248 = vst.msk [vmem:[#allocation2 + $0x10] sm:$0xff] %vm245, %v165
        %249 = vst.msk [vmem:[#allocation2 + $0x18] sm:$0xff] %vm245, %v166
        %250 = vst.msk [vmem:[#allocation2 + $0x20] sm:$0xff] %vm245, %v167
        %251 = vst.msk [vmem:[#allocation2 + $0x28] sm:$0xff] %vm245, %v168
        %252 = vst.msk [vmem:[#allocation2 + $0x30] sm:$0xff] %vm245, %v169
        %253 = vst.msk [vmem:[#allocation2 + $0x38] sm:$0xff] %vm245, %v170
        %254 = vrot.lane.b32.xlu0 %v163, 4
        %v255 = vpop.permute.xlu0 %254
        %256 = vrot.lane.b32.xlu0 %v164, 4
        %v257 = vpop.permute.xlu0 %256
        %258 = vrot.lane.b32.xlu0 %v165, 4
        %v259 = vpop.permute.xlu0 %258
        %260 = vrot.lane.b32.xlu0 %v166, 4
        %v261 = vpop.permute.xlu0 %260
        %262 = vrot.lane.b32.xlu0 %v167, 4
        %v263 = vpop.permute.xlu0 %262
        %264 = vrot.lane.b32.xlu0 %v168, 4
        %v265 = vpop.permute.xlu0 %264
        %266 = vrot.lane.b32.xlu0 %v169, 4
        %v267 = vpop.permute.xlu0 %266
        %268 = vrot.lane.b32.xlu0 %v170, 4
        %v269 = vpop.permute.xlu0 %268
        %vm278 = vcmask 154768
        %279 = vst.msk [vmem:[#allocation2] sm:$0xff] %vm278, %v255
        %280 = vst.msk [vmem:[#allocation2 + $0x8] sm:$0xff] %vm278, %v257
        %281 = vst.msk [vmem:[#allocation2 + $0x10] sm:$0xff] %vm278, %v259
        %282 = vst.msk [vmem:[#allocation2 + $0x18] sm:$0xff] %vm278, %v261
        %283 = vst.msk [vmem:[#allocation2 + $0x20] sm:$0xff] %vm278, %v263
        %284 = vst.msk [vmem:[#allocation2 + $0x28] sm:$0xff] %vm278, %v265
        %285 = vst.msk [vmem:[#allocation2 + $0x30] sm:$0xff] %vm278, %v267
        %286 = vst.msk [vmem:[#allocation2 + $0x38] sm:$0xff] %vm278, %v269
        %287 = vrot.lane.b32.xlu0 %v163, 6
        %v288 = vpop.permute.xlu0 %287
        %289 = vrot.lane.b32.xlu0 %v164, 6
        %v290 = vpop.permute.xlu0 %289
        %291 = vrot.lane.b32.xlu0 %v165, 6
        %v292 = vpop.permute.xlu0 %291
        %293 = vrot.lane.b32.xlu0 %v166, 6
        %v294 = vpop.permute.xlu0 %293
        %295 = vrot.lane.b32.xlu0 %v167, 6
        %v296 = vpop.permute.xlu0 %295
        %297 = vrot.lane.b32.xlu0 %v168, 6
        %v298 = vpop.permute.xlu0 %297
        %299 = vrot.lane.b32.xlu0 %v169, 6
        %v300 = vpop.permute.xlu0 %299
        %301 = vrot.lane.b32.xlu0 %v170, 6
        %v302 = vpop.permute.xlu0 %301
        %vm311 = vcmask 162968
        %312 = vst.msk [vmem:[#allocation2] sm:$0xff] %vm311, %v288
        %313 = vst.msk [vmem:[#allocation2 + $0x8] sm:$0xff] %vm311, %v290
        %314 = vst.msk [vmem:[#allocation2 + $0x10] sm:$0xff] %vm311, %v292
        %315 = vst.msk [vmem:[#allocation2 + $0x18] sm:$0xff] %vm311, %v294
        %316 = vst.msk [vmem:[#allocation2 + $0x20] sm:$0xff] %vm311, %v296
        %317 = vst.msk [vmem:[#allocation2 + $0x28] sm:$0xff] %vm311, %v298
        %318 = vst.msk [vmem:[#allocation2 + $0x30] sm:$0xff] %vm311, %v300
        %319 = vst.msk [vmem:[#allocation2 + $0x38] sm:$0xff] %vm311, %v302
        %v320 = vld [vmem:[#allocation2] sm:$0xff]
        %v321 = vld [vmem:[#allocation2 + $0x8] sm:$0xff]
        %v322 = vld [vmem:[#allocation2 + $0x10] sm:$0xff]
        %v323 = vld [vmem:[#allocation2 + $0x18] sm:$0xff]
        %v324 = vld [vmem:[#allocation2 + $0x20] sm:$0xff]
        %v325 = vld [vmem:[#allocation2 + $0x28] sm:$0xff]
        %v326 = vld [vmem:[#allocation2 + $0x30] sm:$0xff]
        %v327 = vld [vmem:[#allocation2 + $0x38] sm:$0xff]
        %v328 = vmul.f32 %v320, 0.125
        %v329 = vmul.f32 %v321, 0.125
        %v330 = vmul.f32 %v322, 0.125
        %v331 = vmul.f32 %v323, 0.125
        %v332 = vmul.f32 %v324, 0.125
        %v333 = vmul.f32 %v325, 0.125
        %v334 = vmul.f32 %v326, 0.125
        %v335 = vmul.f32 %v327, 0.125
        %v336 = vmul.f32 %v320, 0.5
        %v337 = vmul.f32 %v321, 0.5
        %v338 = vmul.f32 %v322, 0.5
        %v339 = vmul.f32 %v323, 0.5
        %v340 = vmul.f32 %v324, 0.5
        %v341 = vmul.f32 %v325, 0.5
        %v342 = vmul.f32 %v326, 0.5
        %v343 = vmul.f32 %v327, 0.5
        %352 = vrot.lane.b32.xlu0 %v336, 127
        %v353 = vpop.permute.xlu0 %352
        %354 = vrot.lane.b32.xlu0 %v337, 127
        %v355 = vpop.permute.xlu0 %354
        %356 = vrot.lane.b32.xlu0 %v338, 127
        %v357 = vpop.permute.xlu0 %356
        %358 = vrot.lane.b32.xlu0 %v339, 127
        %v359 = vpop.permute.xlu0 %358
        %360 = vrot.lane.b32.xlu0 %v340, 127
        %v361 = vpop.permute.xlu0 %360
        %362 = vrot.lane.b32.xlu0 %v341, 127
        %v363 = vpop.permute.xlu0 %362
        %364 = vrot.lane.b32.xlu0 %v342, 127
        %v365 = vpop.permute.xlu0 %364
        %366 = vrot.lane.b32.xlu0 %v343, 127
        %v367 = vpop.permute.xlu0 %366
        %v376 = vadd.f32 %v328, %v353
        %v377 = vadd.f32 %v329, %v355
        %v378 = vadd.f32 %v330, %v357
        %v379 = vadd.f32 %v331, %v359
        %v380 = vadd.f32 %v332, %v361
        %v381 = vadd.f32 %v333, %v363
        %v382 = vadd.f32 %v334, %v365
        %v383 = vadd.f32 %v335, %v367
        %v384 = vmul.f32 %v320, 0.75
        %v385 = vmul.f32 %v321, 0.75
        %v386 = vmul.f32 %v322, 0.75
        %v387 = vmul.f32 %v323, 0.75
        %v388 = vmul.f32 %v324, 0.75
        %v389 = vmul.f32 %v325, 0.75
        %v390 = vmul.f32 %v326, 0.75
        %v391 = vmul.f32 %v327, 0.75
        %400 = vrot.lane.b32.xlu0 %v384, 126
        %v401 = vpop.permute.xlu0 %400
        %402 = vrot.lane.b32.xlu0 %v385, 126
        %v403 = vpop.permute.xlu0 %402
        %404 = vrot.lane.b32.xlu0 %v386, 126
        %v405 = vpop.permute.xlu0 %404
        %406 = vrot.lane.b32.xlu0 %v387, 126
        %v407 = vpop.permute.xlu0 %406
        %408 = vrot.lane.b32.xlu0 %v388, 126
        %v409 = vpop.permute.xlu0 %408
        %410 = vrot.lane.b32.xlu0 %v389, 126
        %v411 = vpop.permute.xlu0 %410
        %412 = vrot.lane.b32.xlu0 %v390, 126
        %v413 = vpop.permute.xlu0 %412
        %414 = vrot.lane.b32.xlu0 %v391, 126
        %v415 = vpop.permute.xlu0 %414
        %v424 = vadd.f32 %v376, %v401
        %v425 = vadd.f32 %v377, %v403
        %v426 = vadd.f32 %v378, %v405
        %v427 = vadd.f32 %v379, %v407
        %v428 = vadd.f32 %v380, %v409
        %v429 = vadd.f32 %v381, %v411
        %v430 = vadd.f32 %v382, %v413
        %v431 = vadd.f32 %v383, %v415
        %432 = vrot.lane.b32.xlu0 %v336, 125
        %v433 = vpop.permute.xlu0 %432
        %434 = vrot.lane.b32.xlu0 %v337, 125
        %v435 = vpop.permute.xlu0 %434
        %436 = vrot.lane.b32.xlu0 %v338, 125
        %v437 = vpop.permute.xlu0 %436
        %438 = vrot.lane.b32.xlu0 %v339, 125
        %v439 = vpop.permute.xlu0 %438
        %440 = vrot.lane.b32.xlu0 %v340, 125
        %v441 = vpop.permute.xlu0 %440
        %442 = vrot.lane.b32.xlu0 %v341, 125
        %v443 = vpop.permute.xlu0 %442
        %444 = vrot.lane.b32.xlu0 %v342, 125
        %v445 = vpop.permute.xlu0 %444
        %446 = vrot.lane.b32.xlu0 %v343, 125
        %v447 = vpop.permute.xlu0 %446
        %v456 = vadd.f32 %v424, %v433
        %v457 = vadd.f32 %v425, %v435
        %v458 = vadd.f32 %v426, %v437
        %v459 = vadd.f32 %v427, %v439
        %v460 = vadd.f32 %v428, %v441
        %v461 = vadd.f32 %v429, %v443
        %v462 = vadd.f32 %v430, %v445
        %v463 = vadd.f32 %v431, %v447
        %472 = vrot.lane.b32.xlu0 %v328, 124
        %v473 = vpop.permute.xlu0 %472
        %474 = vrot.lane.b32.xlu0 %v329, 124
        %v475 = vpop.permute.xlu0 %474
        %476 = vrot.lane.b32.xlu0 %v330, 124
        %v477 = vpop.permute.xlu0 %476
        %478 = vrot.lane.b32.xlu0 %v331, 124
        %v479 = vpop.permute.xlu0 %478
        %480 = vrot.lane.b32.xlu0 %v332, 124
        %v481 = vpop.permute.xlu0 %480
        %482 = vrot.lane.b32.xlu0 %v333, 124
        %v483 = vpop.permute.xlu0 %482
        %484 = vrot.lane.b32.xlu0 %v334, 124
        %v485 = vpop.permute.xlu0 %484
        %486 = vrot.lane.b32.xlu0 %v335, 124
        %v487 = vpop.permute.xlu0 %486
        %v496 = vadd.f32 %v456, %v473
        %v497 = vadd.f32 %v457, %v475
        %v498 = vadd.f32 %v458, %v477
        %v499 = vadd.f32 %v459, %v479
        %v500 = vadd.f32 %v460, %v481
        %v501 = vadd.f32 %v461, %v483
        %v502 = vadd.f32 %v462, %v485
        %v503 = vadd.f32 %v463, %v487
        %v504 = vlaneseq
        %v505 = vshrl.u32 %v504, 7
        %v506 = vadd.s32 %v505, 8
        %vm507 = vcmp.lt.s32.totalorder %v505, 0
        %v508 = vsub.s32 0, %v505
        %v509 = vsel %vm507, %v508, %v505
        %v510 = vshrl.u32 %v509, 1
        %v511 = vand.u32 %v509, 1
        %v512 = vsub.s32 0, %v511
        %v513 = vsel %vm507, %v512, %v511
        %vm514 = vcmp.lt.s32.totalorder %v506, 0
        %v515 = vsub.s32 0, %v506
        %v516 = vsel %vm514, %v515, %v506
        %v517 = vshrl.u32 %v516, 1
        %v518 = vand.u32 %v516, 1
        %v519 = vsub.s32 0, %v518
        %v520 = vsel %vm514, %v519, %v518
        %vm521 = vcmp.ne.s32.totalorder %v513, 0
        %vm522 = vcmp.ne.s32.totalorder %v520, 0
        %vm523 = vcmp.lt.s32.totalorder %v513, 0
        %vm524 = vcmp.lt.s32.totalorder %v520, 0
        %vm525 = vmand %vm523, %vm521
        %vm526 = vmand %vm524, %vm522
        %v527 = vadd.s32 %v513, 2
        %v528 = vadd.s32 %v520, 2
        %v529 = vsel %vm525, %v527, %v513
        %v530 = vsel %vm526, %v528, %v520
        %vm531 = vcmp.eq.s32.totalorder %v529, 0
        %vm532 = vcmp.eq.s32.totalorder %v530, 0
        %v533 = vsel %vm531, 1, 0
        %v534 = vsel %vm532, 1, 0
        %v535 = vcvt.s32.f32 %v533
        %v536 = vcvt.s32.f32 %v534
        %v537 = vmul.f32 %v496, %v535
        %v538 = vmul.f32 %v497, %v536
        %v539 = vmul.f32 %v498, %v535
        %v540 = vmul.f32 %v499, %v536
        %v541 = vmul.f32 %v500, %v535
        %v542 = vmul.f32 %v501, %v536
        %v543 = vmul.f32 %v502, %v535
        %v544 = vmul.f32 %v503, %v536
        %vm545 = vcmask 130048
        %546 = vst.msk [vmem:[#allocation3 + $0x2] sm:$0xff] %vm545, %v537
        %547 = vst.msk [vmem:[#allocation3 + $0xa] sm:$0xff] %vm545, %v538
        %548 = vst.msk [vmem:[#allocation3 + $0x1a] sm:$0xff] %vm545, %v539
        %549 = vst.msk [vmem:[#allocation3 + $0x22] sm:$0xff] %vm545, %v540
        %550 = vst.msk [vmem:[#allocation3 + $0x32] sm:$0xff] %vm545, %v541
        %551 = vst.msk [vmem:[#allocation3 + $0x3a] sm:$0xff] %vm545, %v542
        %552 = vst.msk [vmem:[#allocation3 + $0x4a] sm:$0xff] %vm545, %v543
        %553 = vst.msk [vmem:[#allocation3 + $0x52] sm:$0xff] %vm545, %v544
        %vm554 = vcmask 124930
        %555 = vst.msk [vmem:[#allocation3 - $0x2] sm:$0x4] %vm554, %v537
        %556 = vst.msk [vmem:[#allocation3 + $0x16] sm:$0x4] %vm554, %v539
        %557 = vst.msk [vmem:[#allocation3 + $0x2e] sm:$0x4] %vm554, %v541
        %558 = vst.msk [vmem:[#allocation3 + $0x46] sm:$0x4] %vm554, %v543
        %vm559 = vcmask 123905
        %560 = vst.msk [vmem:[#allocation3] sm:$0x2] %vm559, %v537
        %561 = vst.msk [vmem:[#allocation3 + $0x18] sm:$0x2] %vm559, %v539
        %562 = vst.msk [vmem:[#allocation3 + $0x30] sm:$0x2] %vm559, %v541
        %563 = vst.msk [vmem:[#allocation3 + $0x48] sm:$0x2] %vm559, %v543
        %vm564 = vcmask 129030
        %565 = vst.msk [vmem:[#allocation3 + $0xc] sm:$0x40] %vm564, %v538
        %566 = vst.msk [vmem:[#allocation3 + $0x24] sm:$0x40] %vm564, %v540
        %567 = vst.msk [vmem:[#allocation3 + $0x3c] sm:$0x40] %vm564, %v542
        %568 = vst.msk [vmem:[#allocation3 + $0x54] sm:$0x40] %vm564, %v544
        %vm569 = vcmask 128005
        %570 = vst.msk [vmem:[#allocation3 + $0xe] sm:$0x20] %vm569, %v538
        %571 = vst.msk [vmem:[#allocation3 + $0x26] sm:$0x20] %vm569, %v540
        %572 = vst.msk [vmem:[#allocation3 + $0x3e] sm:$0x20] %vm569, %v542
        %573 = vst.msk [vmem:[#allocation3 + $0x56] sm:$0x20] %vm569, %v544
        %v574 = vld [vmem:[#allocation3] sm:$0xff]
        %v575 = vld [vmem:[#allocation3 + $0x8] sm:$0xff]
        %v576 = vld [vmem:[#allocation3 + $0x18] sm:$0xff]
        %v577 = vld [vmem:[#allocation3 + $0x20] sm:$0xff]
        %v578 = vld [vmem:[#allocation3 + $0x30] sm:$0xff]
        %v579 = vld [vmem:[#allocation3 + $0x38] sm:$0xff]
        %v580 = vld [vmem:[#allocation3 + $0x48] sm:$0xff]
        %v581 = vld [vmem:[#allocation3 + $0x50] sm:$0xff]
        %v582 = vmul.f32 %v574, 0.125
        %v583 = vmul.f32 %v575, 0.125
        %v584 = vmul.f32 %v576, 0.125
        %v585 = vmul.f32 %v577, 0.125
        %v586 = vmul.f32 %v578, 0.125
        %v587 = vmul.f32 %v579, 0.125
        %v588 = vmul.f32 %v580, 0.125
        %v589 = vmul.f32 %v581, 0.125
        %v590 = vld [vmem:[#allocation3 + $0x1] sm:$0xff]
        %v591 = vld [vmem:[#allocation3 + $0x9] sm:$0xff]
        %v592 = vld [vmem:[#allocation3 + $0x19] sm:$0xff]
        %v593 = vld [vmem:[#allocation3 + $0x21] sm:$0xff]
        %v594 = vld [vmem:[#allocation3 + $0x31] sm:$0xff]
        %v595 = vld [vmem:[#allocation3 + $0x39] sm:$0xff]
        %v596 = vld [vmem:[#allocation3 + $0x49] sm:$0xff]
        %v597 = vld [vmem:[#allocation3 + $0x51] sm:$0xff]
        %v598 = vmul.f32 %v590, 0.5
        %v599 = vmul.f32 %v591, 0.5
        %v600 = vmul.f32 %v592, 0.5
        %v601 = vmul.f32 %v593, 0.5
        %v602 = vmul.f32 %v594, 0.5
        %v603 = vmul.f32 %v595, 0.5
        %v604 = vmul.f32 %v596, 0.5
        %v605 = vmul.f32 %v597, 0.5
        %v606 = vadd.f32 %v582, %v598
        %v607 = vadd.f32 %v583, %v599
        %v608 = vadd.f32 %v584, %v600
        %v609 = vadd.f32 %v585, %v601
        %v610 = vadd.f32 %v586, %v602
        %v611 = vadd.f32 %v587, %v603
        %v612 = vadd.f32 %v588, %v604
        %v613 = vadd.f32 %v589, %v605
        %v614 = vld [vmem:[#allocation3 + $0x2] sm:$0xff]
        %v615 = vld [vmem:[#allocation3 + $0xa] sm:$0xff]
        %v616 = vld [vmem:[#allocation3 + $0x1a] sm:$0xff]
        %v617 = vld [vmem:[#allocation3 + $0x22] sm:$0xff]
        %v618 = vld [vmem:[#allocation3 + $0x32] sm:$0xff]
        %v619 = vld [vmem:[#allocation3 + $0x3a] sm:$0xff]
        %v620 = vld [vmem:[#allocation3 + $0x4a] sm:$0xff]
        %v621 = vld [vmem:[#allocation3 + $0x52] sm:$0xff]
        %v622 = vmul.f32 %v614, 0.75
        %v623 = vmul.f32 %v615, 0.75
        %v624 = vmul.f32 %v616, 0.75
        %v625 = vmul.f32 %v617, 0.75
        %v626 = vmul.f32 %v618, 0.75
        %v627 = vmul.f32 %v619, 0.75
        %v628 = vmul.f32 %v620, 0.75
        %v629 = vmul.f32 %v621, 0.75
        %v630 = vadd.f32 %v606, %v622
        %v631 = vadd.f32 %v607, %v623
        %v632 = vadd.f32 %v608, %v624
        %v633 = vadd.f32 %v609, %v625
        %v634 = vadd.f32 %v610, %v626
        %v635 = vadd.f32 %v611, %v627
        %v636 = vadd.f32 %v612, %v628
        %v637 = vadd.f32 %v613, %v629
        %v638 = vld [vmem:[#allocation3 + $0x3] sm:$0xff]
        %v639 = vld [vmem:[#allocation3 + $0xb] sm:$0xff]
        %v640 = vld [vmem:[#allocation3 + $0x1b] sm:$0xff]
        %v641 = vld [vmem:[#allocation3 + $0x23] sm:$0xff]
        %v642 = vld [vmem:[#allocation3 + $0x33] sm:$0xff]
        %v643 = vld [vmem:[#allocation3 + $0x3b] sm:$0xff]
        %v644 = vld [vmem:[#allocation3 + $0x4b] sm:$0xff]
        %v645 = vld [vmem:[#allocation3 + $0x53] sm:$0xff]
        %v646 = vmul.f32 %v638, 0.5
        %v647 = vmul.f32 %v639, 0.5
        %v648 = vmul.f32 %v640, 0.5
        %v649 = vmul.f32 %v641, 0.5
        %v650 = vmul.f32 %v642, 0.5
        %v651 = vmul.f32 %v643, 0.5
        %v652 = vmul.f32 %v644, 0.5
        %v653 = vmul.f32 %v645, 0.5
        %v654 = vadd.f32 %v630, %v646
        %v655 = vadd.f32 %v631, %v647
        %v656 = vadd.f32 %v632, %v648
        %v657 = vadd.f32 %v633, %v649
        %v658 = vadd.f32 %v634, %v650
        %v659 = vadd.f32 %v635, %v651
        %v660 = vadd.f32 %v636, %v652
        %v661 = vadd.f32 %v637, %v653
        %v662 = vld [vmem:[#allocation3 + $0x4] sm:$0xff]
        %v663 = vld [vmem:[#allocation3 + $0xc] sm:$0xff]
        %v664 = vld [vmem:[#allocation3 + $0x1c] sm:$0xff]
        %v665 = vld [vmem:[#allocation3 + $0x24] sm:$0xff]
        %v666 = vld [vmem:[#allocation3 + $0x34] sm:$0xff]
        %v667 = vld [vmem:[#allocation3 + $0x3c] sm:$0xff]
        %v668 = vld [vmem:[#allocation3 + $0x4c] sm:$0xff]
        %v669 = vld [vmem:[#allocation3 + $0x54] sm:$0xff]
        %v670 = vmul.f32 %v662, 0.125
        %v671 = vmul.f32 %v663, 0.125
        %v672 = vmul.f32 %v664, 0.125
        %v673 = vmul.f32 %v665, 0.125
        %v674 = vmul.f32 %v666, 0.125
        %v675 = vmul.f32 %v667, 0.125
        %v676 = vmul.f32 %v668, 0.125
        %v677 = vmul.f32 %v669, 0.125
        %v678 = vadd.f32 %v654, %v670
        %v679 = vadd.f32 %v655, %v671
        %v680 = vadd.f32 %v656, %v672
        %v681 = vadd.f32 %v657, %v673
        %v682 = vadd.f32 %v658, %v674
        %v683 = vadd.f32 %v659, %v675
        %v684 = vadd.f32 %v660, %v676
        %v685 = vadd.f32 %v661, %v677
        %v686 = vsub.f32 %v138, %v678
        %v687 = vsub.f32 %v139, %v679
        %v688 = vsub.f32 %v140, %v680
        %v689 = vsub.f32 %v141, %v681
        %v690 = vsub.f32 %v142, %v682
        %v691 = vsub.f32 %v143, %v683
        %v692 = vsub.f32 %v144, %v684
        %v693 = vsub.f32 %v145, %v685
        %694 = vst.msk [vmem:[%s135] sm:$0xff] %vm545, %v686
        %695 = vst.msk [vmem:[%s135 + $0x8] sm:$0xff] %vm545, %v687
        %696 = vst.msk [vmem:[%s135 + $0x10] sm:$0xff] %vm545, %v688
        %697 = vst.msk [vmem:[%s135 + $0x18] sm:$0xff] %vm545, %v689
        %698 = vst.msk [vmem:[%s135 + $0x20] sm:$0xff] %vm545, %v690
        %699 = vst.msk [vmem:[%s135 + $0x28] sm:$0xff] %vm545, %v691
        %700 = vst.msk [vmem:[%s135 + $0x30] sm:$0xff] %vm545, %v692
        %701 = vst.msk [vmem:[%s135 + $0x38] sm:$0xff] %vm545, %v693
        %s702 = sand.u32 %s52, 1
        %s703 = scalar_lea.sflag [#allocation6], %s702
        %s704 = sand.u32 %s52, 1
        %s705 = smul.addr %s704, 64
        %s706 = scalar_lea.vmem [#allocation7], %s705
        // Predicated region
        $region29: #{tpu_custom_call.1} parent=23 // pred_check
          %p707 = pneg %p62
        $region30: #{tpu_custom_call.1} parent=23 // pred_check_branch
          %709 = sbr.rel (%p707) target = $region32
        $region31: #{tpu_custom_call.1} parent=23 // pred_region
          %s710 = smul.u32 4, %s18
          %s712 = ssub.s32 1024, 1024
          %713 = vsyncadd %s703, %s712
          %s714 = smul.addr %s710, 2
          %s715 = smul.addr %s714, 128
          %s716 = scalar_lea.hbm %s1, %s715
          %s717 = sshll.u32 %s706, 4
          %s718 = int_to_ptr.vmem [resolvable:$true] %s717
          %723 = dma.vmem_to_hbm [thread:$0]  %s718, 1024, %s716, %s703, 128, 128, 8
        $region32: #{tpu_custom_call.1} parent=23 // pred_fallthru
          _
      $region24: #{tpu_custom_call.1} parent=5 // pred_fallthru
        _
      %p724 = scmp.le.s32.totalorder 2, %s13
      // Predicated region
      $region33: #{tpu_custom_call.1} parent=5 // pred_check
        %p725 = pneg %p724
      $region34: #{tpu_custom_call.1} parent=5 // pred_check_branch
        %727 = sbr.rel (%p725) target = $region36
      $region35: #{tpu_custom_call.1} parent=5 // pred_region
        %s728 = ssub.s32 %s13, 2
        // Predicated region
        $region37: #{tpu_custom_call.1} parent=35 // pred_check
          %p729 = pneg %p68
        $region38: #{tpu_custom_call.1} parent=35 // pred_check_branch
          %731 = sbr.rel (%p729) target = $region40
        $region39: #{tpu_custom_call.1} parent=35 // pred_region
          %s732 = sand.u32 %s53, 1
          %s733 = scalar_lea.sflag [#allocation6], %s732
          %s734 = sand.u32 %s53, 1
          %s735 = smul.addr %s734, 64
          %s736 = scalar_lea.vmem [#allocation7], %s735
          %737 = dma.done %s733, 1024
        $region40: #{tpu_custom_call.1} parent=35 // pred_fallthru
          _
      $region36: #{tpu_custom_call.1} parent=5 // pred_fallthru
        _
    $region6: #{tpu_custom_call.1} parent=1 // loop_footer
      %s17 = sadd.s32 1, %s13
    $region7: #{tpu_custom_call.1} parent=1 // loop_footer_branch
      %12 = sbr.rel target = $region3
    $region8: #{tpu_custom_call.1} parent=1 // loop_exit
      _
    %738 = vsyncpa [#allocation5], 1
    %s739 = scalar_lea.sflag [#allocation5], 1
    %740 = vsyncpa %s739, 1
    %741 = vsyncpa [#allocation6], 1
    %s742 = scalar_lea.sflag [#allocation6], 1
    %743 = vsyncpa %s742, 1

</llo_original>
